<compile_context>
chip_gen: v7x
topology: tpu7x:2x2x1
jax: 0.10.0
libtpu: 0.0.40
codegen_flags: <defaults>
</compile_context>

<pallas_src>
import functools

import jax
import jax.numpy as jnp
from jax import lax
from jax.experimental import pallas as pl
from jax.experimental.pallas import tpu as pltpu

BN_EPS = 1e-5
_ROW_TILE = 256                     # rows (output positions / stride) per tile
_VMEM_LIMIT = 32 * 1024 * 1024      # explicit scoped-VMEM budget (fits v5e/v6e/v7x)


# ----------------------------------------------------------------------------
# Polyphase decomposition of ConvTranspose1d (no zero-stuffing, no im2col)
#
#   out[n, s*m + r, co] = sum_{t, ci} x_pad[n, m + t, ci] * wmat[t*Cin+ci, r*Cout+co]
#
# where x_pad[i] = x[i + dmin] (zero outside) and wmat packs the kernel taps
# used by phase r at window offset t.
# ----------------------------------------------------------------------------
def _phase_taps(K, stride, pad):
    taps = []
    for r in range(stride):
        kk0 = (r + pad) % stride
        for kk in range(kk0, K, stride):
            taps.append((r, kk, (r + pad - kk) // stride))
    return taps


def _phase_weight_matrix(w, stride, pad):
    """PyTorch ConvTranspose1d weight (Cin, Cout, K) -> (T*Cin, stride*Cout)."""
    cin, cout, K = w.shape
    taps = _phase_taps(K, stride, pad)
    dmin = min(d for _, _, d in taps)
    dmax = max(d for _, _, d in taps)
    T = dmax - dmin + 1
    wmat = jnp.zeros((T * cin, stride * cout), w.dtype)
    for r, kk, d in taps:
        t = d - dmin
        wmat = wmat.at[t * cin:(t + 1) * cin, r * cout:(r + 1) * cout].set(w[:, :, kk])
    return wmat, dmin, dmax, T


def _pad_for_phases(x_nlc, stride, K, pad, dmin, dmax):
    n, l, c = x_nlc.shape
    l_out = (l - 1) * stride - 2 * pad + K
    assert l_out % stride == 0
    M = l_out // stride
    left = -dmin
    right = (M - 1 + dmax) - (l - 1)
    assert left >= 0 and right >= 0
    xp = jnp.pad(x_nlc, ((0, 0), (left, right), (0, 0)))
    return xp, M, l_out


# ----------------------------------------------------------------------------
# Pass 1: ConvTranspose matmul (polyphase, bf16 MXU) + per-channel sum/sumsq
# ----------------------------------------------------------------------------
def _convT_stats_kernel(xp_ref, w_ref, y_ref, stats_ref, *, taps, cin, single_tile):
    i = pl.program_id(1)

    @pl.when(i == 0)
    def _init():
        stats_ref[...] = jnp.zeros_like(stats_ref)

    tm = y_ref.shape[1]
    if single_tile:
        m0 = 0
    else:
        m0 = pl.multiple_of(i * tm, tm)

    acc = jnp.zeros((tm, w_ref.shape[1]), jnp.float32)
    for t in range(taps):                                   # static, <= 4 taps
        xs = xp_ref[0, pl.ds(m0 + t, tm), :]
        wt = w_ref[t * cin:(t + 1) * cin, :]
        acc = acc + jnp.dot(xs, wt, preferred_element_type=jnp.float32)

    y_ref[0] = acc.astype(y_ref.dtype)
    tile_sum = jnp.sum(acc, axis=0, keepdims=True)
    tile_sq = jnp.sum(acc * acc, axis=0, keepdims=True)
    stats_ref[0] = stats_ref[0] + jnp.concatenate([tile_sum, tile_sq], axis=0)


def _convT_phase_matmul(xp, wmat, taps, M, tm, out_dtype):
    n, mp, cin = xp.shape
    kdim, sc = wmat.shape
    kernel = functools.partial(_convT_stats_kernel, taps=taps, cin=cin,
                               single_tile=(M == tm))
    return pl.pallas_call(
        kernel,
        out_shape=(jax.ShapeDtypeStruct((n, M, sc), out_dtype),
                   jax.ShapeDtypeStruct((n, 2, sc), jnp.float32)),
        grid_spec=pltpu.PrefetchScalarGridSpec(
            num_scalar_prefetch=0,
            grid=(n, M // tm),
            in_specs=[pl.BlockSpec((1, mp, cin), lambda b, i: (b, 0, 0)),
                      pl.BlockSpec((kdim, sc), lambda b, i: (0, 0))],
            out_specs=(pl.BlockSpec((1, tm, sc), lambda b, i: (b, i, 0)),
                       pl.BlockSpec((1, 2, sc), lambda b, i: (b, 0, 0)))),
        compiler_params=pltpu.CompilerParams(
            dimension_semantics=("parallel", "arbitrary"),
            vmem_limit_bytes=_VMEM_LIMIT),
    )(xp, wmat)


# ----------------------------------------------------------------------------
# Pass 2: normalize + scale + ReLU (cheap, fully parallel grid)
# ----------------------------------------------------------------------------
def _bn_relu_kernel(y_ref, scale_ref, shift_ref, o_ref):
    y = y_ref[...].astype(jnp.float32)
    o_ref[...] = jnp.maximum(y * scale_ref[...] + shift_ref[...], 0.0).astype(o_ref.dtype)


def _bn_relu(y, scale_rc, shift_rc, tm):
    n, M, sc = y.shape
    return pl.pallas_call(
        _bn_relu_kernel,
        out_shape=jax.ShapeDtypeStruct((n, M, sc), y.dtype),
        grid_spec=pltpu.PrefetchScalarGridSpec(
            num_scalar_prefetch=0,
            grid=(n, M // tm),
            in_specs=[pl.BlockSpec((1, tm, sc), lambda b, i: (b, i, 0)),
                      pl.BlockSpec((1, sc), lambda b, i: (0, 0)),
                      pl.BlockSpec((1, sc), lambda b, i: (0, 0))],
            out_specs=pl.BlockSpec((1, tm, sc), lambda b, i: (b, i, 0))),
        compiler_params=pltpu.CompilerParams(
            dimension_semantics=("parallel", "parallel"),
            vmem_limit_bytes=_VMEM_LIMIT),
    )(y, scale_rc, shift_rc)


# ----------------------------------------------------------------------------
# Final layer: ConvTranspose1d (Cout=nc) + tanh on the VPU, lane-dense output
# (length on the lane axis, channels/phases on sublanes).
# ----------------------------------------------------------------------------
def _convT_tanh_kernel(xp_ref, w_ref, o_ref, *, taps):
    n_rc, m = o_ref.shape[1], o_ref.shape[2]
    x = xp_ref[0].astype(jnp.float32)            # (Cin, Mp), L on lanes
    w = w_ref[...].astype(jnp.float32)           # (Cin, n_rc * taps)
    rows = []
    for rc in range(n_rc):                       # static: stride * nc (= 2)
        acc = jnp.zeros((1, m), jnp.float32)
        for t in range(taps):                    # static: <= 3 taps
            col = w[:, rc * taps + t: rc * taps + t + 1]      # (Cin, 1)
            acc = acc + jnp.sum(x[:, t:t + m] * col, axis=0, keepdims=True)
        rows.append(jnp.tanh(acc))
    o_ref[0] = jnp.concatenate(rows, axis=0).astype(o_ref.dtype)


def _convT_tanh_layer(x_nlc, layer, compute_dtype):
    w = layer["w"]
    stride, K, pad = layer["stride"], layer["kernel"], layer["pad"]
    cin, cout, _ = w.shape
    n = x_nlc.shape[0]
    wmat, dmin, dmax, T = _phase_weight_matrix(w, stride, pad)
    xp, M, l_out = _pad_for_phases(x_nlc, stride, K, pad, dmin, dmax)

    xp_cf = jnp.transpose(xp, (0, 2, 1)).astype(compute_dtype)       # (N, Cin, Mp)
    # column j = (r*Cout+co)*T + t  holds W[ci, co, kk(r, t)]
    w_cf = jnp.transpose(wmat.reshape(T, cin, stride * cout), (1, 2, 0))
    w_cf = w_cf.reshape(cin, stride * cout * T).astype(jnp.float32)

    kernel = functools.partial(_convT_tanh_kernel, taps=T)
    y = pl.pallas_call(
        kernel,
        out_shape=jax.ShapeDtypeStruct((n, stride * cout, M), jnp.float32),
        grid_spec=pltpu.PrefetchScalarGridSpec(
            num_scalar_prefetch=0,
            grid=(n,),
            in_specs=[pl.BlockSpec((1, cin, xp_cf.shape[2]), lambda b: (b, 0, 0)),
                      pl.BlockSpec((cin, stride * cout * T), lambda b: (0, 0))],
            out_specs=pl.BlockSpec((1, stride * cout, M), lambda b: (b, 0, 0))),
        compiler_params=pltpu.CompilerParams(
            dimension_semantics=("parallel",),
            vmem_limit_bytes=_VMEM_LIMIT),
    )(xp_cf, w_cf)
    # y[n, r*Cout+co, m] -> out[n, co, stride*m + r]   (PyTorch NCL layout)
    y = y.reshape(n, stride, cout, M)
    return jnp.transpose(y, (0, 2, 3, 1)).reshape(n, cout, M * stride)


# ----------------------------------------------------------------------------
# Full BN layer wrapper (two fused Pallas passes + tiny per-channel math)
# ----------------------------------------------------------------------------
def _convT_bn_relu_layer(x_nlc, layer, compute_dtype):
    n = x_nlc.shape[0]
    w, gamma, beta = layer["w"], layer["gamma"], layer["beta"]
    stride, K, pad = layer["stride"], layer["kernel"], layer["pad"]
    cin, cout, _ = w.shape
    wmat, dmin, dmax, T = _phase_weight_matrix(w, stride, pad)
    xp, M, l_out = _pad_for_phases(x_nlc, stride, K, pad, dmin, dmax)
    tm = M if M <= _ROW_TILE else _ROW_TILE

    y, stats = _convT_phase_matmul(xp.astype(compute_dtype),
                                   wmat.astype(compute_dtype), T, M, tm,
                                   compute_dtype)

    # Per-channel affine from the one-pass sum/sumsq (training-mode BN stats).
    s = stats.sum(axis=0)                                  # (2, stride*Cout)
    s = s.reshape(2, stride, cout).sum(axis=1)             # phases share channels
    count = n * l_out
    mean = s[0] / count
    var = jnp.maximum(s[1] / count - mean * mean, 0.0)     # clamp cancellation
    inv = lax.rsqrt(var + BN_EPS)
    scale = gamma * inv
    shift = beta - mean * scale
    scale_rc = jnp.tile(scale, stride).reshape(1, stride * cout).astype(jnp.float32)
    shift_rc = jnp.tile(shift, stride).reshape(1, stride * cout).astype(jnp.float32)

    out = _bn_relu(y, scale_rc, shift_rc, tm)              # (N, M, stride*Cout)
    # Free (row-major) reshape interleaves the phases -> next layer's layout.
    return out.reshape(n, l_out, cout)


# ----------------------------------------------------------------------------
# Model: parameter init + forward
# ----------------------------------------------------------------------------
def init_params(key, nz, ngf, nc):
    """Deterministic synthetic parameters (shapes match the PyTorch module)."""
    cfgs = [  # (Cin, Cout, K, stride, pad)
        (nz,       ngf * 32, 4, 1, 0),
        (ngf * 32, ngf * 16, 6, 2, 2),
        (ngf * 16, ngf * 8,  6, 2, 2),
        (ngf * 8,  ngf * 4,  6, 2, 2),
        (ngf * 4,  ngf * 2,  6, 2, 2),
        (ngf * 2,  ngf,      6, 2, 2),
        (ngf,      ngf,      6, 2, 2),
        (ngf,      ngf,      6, 2, 2),
        (ngf,      nc,       4, 2, 1),
    ]
    params = []
    for i, (cin, cout, k, s, p) in enumerate(cfgs):
        key, kw, kg, kb = jax.random.split(key, 4)
        w = 0.02 * jax.random.normal(kw, (cin, cout, k), dtype=jnp.float32)
        if i < len(cfgs) - 1:
            gamma = 1.0 + 0.1 * jax.random.normal(kg, (cout,), dtype=jnp.float32)
            beta = 0.1 * jax.random.normal(kb, (cout,), dtype=jnp.float32)
        else:
            gamma = beta = None
        params.append(dict(w=w, gamma=gamma, beta=beta, stride=s, kernel=k, pad=p))
    return params


def dcgan_funnel_forward(x_ncl, params, compute_dtype=jnp.bfloat16):
    """x_ncl: (N, nz, L_in) -> (N, nc, 1024) float32 (PyTorch NCL layout)."""
    x = jnp.transpose(x_ncl, (0, 2, 1)).astype(compute_dtype)   # -> (N, L, C)
    for layer in params[:-1]:
        x = _convT_bn_relu_layer(x, layer, compute_dtype)
    return _convT_tanh_layer(x, params[-1], compute_dtype)
    # TODO(synk): `measurements()` (fc Linear + .cpu() host transfer) is not part
    # of forward() and is not implemented.


# ----------------------------------------------------------------------------
# Pure-XLA reference (ConvTranspose1d == dilated correlation with flipped kernel)
# ----------------------------------------------------------------------------
def reference_forward(x_ncl, params):
    x = x_ncl.astype(jnp.float32)
    dn = ("NCH", "OIH", "NCH")
    for layer in params:
        w, s, K, p = layer["w"], layer["stride"], layer["kernel"], layer["pad"]
        rhs = jnp.transpose(w[:, :, ::-1], (1, 0, 2))            # (Cout, Cin, K)
        x = lax.conv_general_dilated(x, rhs, window_strides=(1,),
                                     padding=[(K - 1 - p, K - 1 - p)],
                                     lhs_dilation=(s,), rhs_dilation=(1,),
                                     dimension_numbers=dn)
        if layer["gamma"] is not None:
            mean = jnp.mean(x, axis=(0, 2), keepdims=True)
            var = jnp.mean(jnp.square(x - mean), axis=(0, 2), keepdims=True)
            xh = (x - mean) * lax.rsqrt(var + BN_EPS)
            x = jnp.maximum(xh * layer["gamma"][None, :, None]
                            + layer["beta"][None, :, None], 0.0)
        else:
            x = jnp.tanh(x)
    return x


if __name__ == "__main__":
    N, NZ, NGF, NC = 2, 8, 8, 1
    key = jax.random.PRNGKey(0)
    key, kx = jax.random.split(key)
    x = jax.random.normal(kx, (N, NZ, 1), dtype=jnp.float32)     # NCL input
    params = init_params(key, NZ, NGF, NC)

    # Correctness check of the polyphase / two-pass-BN kernels (f32 operand path)
    # against an XLA reference.  Loose tolerance: both paths use default TPU
    # matmul precision.
    y_f32 = jax.block_until_ready(dcgan_funnel_forward(x, params, jnp.float32))
    y_ref = jax.block_until_ready(reference_forward(x, params))
    assert y_f32.shape == (N, NC, 1024), y_f32.shape
    err = float(jnp.max(jnp.abs(y_f32 - y_ref)))
    assert err < 5e-2, f"mismatch vs reference: {err}"

    # Production path: bf16 MXU operands, f32 accumulation / BN stats / tanh.
    y = jax.block_until_ready(dcgan_funnel_forward(x, params, jnp.bfloat16))
    assert y.shape == (N, NC, 1024), y.shape
    assert bool(jnp.all(jnp.isfinite(y)))
    print("KERNEL_OK")
</pallas_src>

<mosaic_0001>
module attributes {stable_mosaic.version = 11 : i64} {
  func.func @_convT_stats_kernel(%arg0: i32, %arg1: i32, %arg2: memref<1x7x8xf32, #tpu.memory_space<vmem>>, %arg3: memref<32x256xf32, #tpu.memory_space<vmem>>, %arg4: memref<1x4x256xf32, #tpu.memory_space<vmem>>, %arg5: memref<1x2x256xf32, #tpu.memory_space<vmem>>) attributes {dimension_semantics = [#tpu.dimension_semantics<parallel>, #tpu.dimension_semantics<arbitrary>], iteration_bounds = array<i64: 2, 1>, scalar_prefetch = 0 : i64, scratch_operands = 0 : i64, tpu.core_type = #tpu.core_type<tc>, window_params = [{transform_indices = @transform_0, window_bounds = array<i64: 1, 7, 8>}, {pipeline_mode = #tpu.pipeline_mode<synchronous>, transform_indices = @transform_1, window_bounds = array<i64: 32, 256>}, {transform_indices = @transform_2, window_bounds = array<i64: 1, 4, 256>}, {transform_indices = @transform_3, window_bounds = array<i64: 1, 2, 256>}]} {
    %c0_i32 = arith.constant 0 : i32
    %0 = arith.cmpi eq, %arg1, %c0_i32 : i32
    %1 = arith.extui %0 : i1 to i32
    %c0_i32_0 = arith.constant 0 : i32
    %2 = arith.cmpi ne, %1, %c0_i32_0 : i32
    scf.if %2 {
      %cst_29 = arith.constant 0.000000e+00 : f32
      %39 = vector.broadcast %cst_29 : f32 to vector<1x2x256xf32>
      %c0_30 = arith.constant 0 : index
      %c0_31 = arith.constant 0 : index
      %c0_32 = arith.constant 0 : index
      %40 = vector.load %arg5[%c0_30, %c0_31, %c0_32] : memref<1x2x256xf32, #tpu.memory_space<vmem>>, vector<1x2x256xf32>
      tpu.vector_store %arg5[%c0_30, %c0_31, %c0_32], %39 {strides = array<i32>} : memref<1x2x256xf32, #tpu.memory_space<vmem>>, vector<1x2x256xf32>,
    } else {
    }
    %cst = arith.constant 0.000000e+00 : f32
    %3 = vector.broadcast %cst : f32 to vector<4x256xf32>
    %c0 = arith.constant 0 : index
    %c0_1 = arith.constant 0 : index
    %c0_2 = arith.constant 0 : index
    %4 = vector.load %arg2[%c0, %c0_1, %c0_2] : memref<1x7x8xf32, #tpu.memory_space<vmem>>, vector<1x4x8xf32>
    %5 = vector.shape_cast %4 : vector<1x4x8xf32> to vector<4x8xf32>
    %c0_3 = arith.constant 0 : index
    %c0_4 = arith.constant 0 : index
    %6 = vector.load %arg3[%c0_3, %c0_4] : memref<32x256xf32, #tpu.memory_space<vmem>>, vector<8x256xf32>
    %cst_5 = arith.constant dense<0.000000e+00> : vector<4x256xf32>
    %7 = tpu.matmul %5, %6, %cst_5 {dimension_numbers = #tpu.dot_dimension_numbers<[1], [0], [0], [1], [0, 0, 1, 1], [], []>} : vector<4x8xf32>, vector<8x256xf32>, vector<4x256xf32> -> vector<4x256xf32>
    %8 = arith.addf %3, %7 : vector<4x256xf32>
    %c0_6 = arith.constant 0 : index
    %c1 = arith.constant 1 : index
    %c0_7 = arith.constant 0 : index
    %9 = vector.load %arg2[%c0_6, %c1, %c0_7] : memref<1x7x8xf32, #tpu.memory_space<vmem>>, vector<1x4x8xf32>
    %10 = vector.shape_cast %9 : vector<1x4x8xf32> to vector<4x8xf32>
    %c8 = arith.constant 8 : index
    %c0_8 = arith.constant 0 : index
    %11 = vector.load %arg3[%c8, %c0_8] : memref<32x256xf32, #tpu.memory_space<vmem>>, vector<8x256xf32>
    %cst_9 = arith.constant dense<0.000000e+00> : vector<4x256xf32>
    %12 = tpu.matmul %10, %11, %cst_9 {dimension_numbers = #tpu.dot_dimension_numbers<[1], [0], [0], [1], [0, 0, 1, 1], [], []>} : vector<4x8xf32>, vector<8x256xf32>, vector<4x256xf32> -> vector<4x256xf32>
    %13 = arith.addf %8, %12 : vector<4x256xf32>
    %c0_10 = arith.constant 0 : index
    %c2 = arith.constant 2 : index
    %c0_11 = arith.constant 0 : index
    %14 = vector.load %arg2[%c0_10, %c2, %c0_11] : memref<1x7x8xf32, #tpu.memory_space<vmem>>, vector<1x4x8xf32>
    %15 = vector.shape_cast %14 : vector<1x4x8xf32> to vector<4x8xf32>
    %c16 = arith.constant 16 : index
    %c0_12 = arith.constant 0 : index
    %16 = vector.load %arg3[%c16, %c0_12] : memref<32x256xf32, #tpu.memory_space<vmem>>, vector<8x256xf32>
    %cst_13 = arith.constant dense<0.000000e+00> : vector<4x256xf32>
    %17 = tpu.matmul %15, %16, %cst_13 {dimension_numbers = #tpu.dot_dimension_numbers<[1], [0], [0], [1], [0, 0, 1, 1], [], []>} : vector<4x8xf32>, vector<8x256xf32>, vector<4x256xf32> -> vector<4x256xf32>
    %18 = arith.addf %13, %17 : vector<4x256xf32>
    %c0_14 = arith.constant 0 : index
    %c3 = arith.constant 3 : index
    %c0_15 = arith.constant 0 : index
    %19 = vector.load %arg2[%c0_14, %c3, %c0_15] : memref<1x7x8xf32, #tpu.memory_space<vmem>>, vector<1x4x8xf32>
    %20 = vector.shape_cast %19 : vector<1x4x8xf32> to vector<4x8xf32>
    %c24 = arith.constant 24 : index
    %c0_16 = arith.constant 0 : index
    %21 = vector.load %arg3[%c24, %c0_16] : memref<32x256xf32, #tpu.memory_space<vmem>>, vector<8x256xf32>
    %cst_17 = arith.constant dense<0.000000e+00> : vector<4x256xf32>
    %22 = tpu.matmul %20, %21, %cst_17 {dimension_numbers = #tpu.dot_dimension_numbers<[1], [0], [0], [1], [0, 0, 1, 1], [], []>} : vector<4x8xf32>, vector<8x256xf32>, vector<4x256xf32> -> vector<4x256xf32>
    %23 = arith.addf %18, %22 : vector<4x256xf32>
    %c0_18 = arith.constant 0 : index
    %c0_19 = arith.constant 0 : index
    %c0_20 = arith.constant 0 : index
    %24 = vector.load %arg4[%c0_18, %c0_19, %c0_20] : memref<1x4x256xf32, #tpu.memory_space<vmem>>, vector<1x4x256xf32>
    %25 = vector.shape_cast %24 : vector<1x4x256xf32> to vector<4x256xf32>
    %26 = vector.shape_cast %23 : vector<4x256xf32> to vector<1x4x256xf32>
    tpu.vector_store %arg4[%c0_18, %c0_19, %c0_20], %26 {strides = array<i32>} : memref<1x4x256xf32, #tpu.memory_space<vmem>>, vector<1x4x256xf32>,
    %cst_21 = arith.constant dense<0.000000e+00> : vector<256xf32>
    %27 = vector.multi_reduction <add>, %23, %cst_21 [0] : vector<4x256xf32> to vector<256xf32>
    %28 = vector.shape_cast %27 : vector<256xf32> to vector<1x256xf32>
    %29 = arith.mulf %23, %23 : vector<4x256xf32>
    %cst_22 = arith.constant dense<0.000000e+00> : vector<256xf32>
    %30 = vector.multi_reduction <add>, %29, %cst_22 [0] : vector<4x256xf32> to vector<256xf32>
    %31 = vector.shape_cast %30 : vector<256xf32> to vector<1x256xf32>
    %c0_23 = arith.constant 0 : index
    %c0_24 = arith.constant 0 : index
    %c0_25 = arith.constant 0 : index
    %32 = vector.load %arg5[%c0_23, %c0_24, %c0_25] : memref<1x2x256xf32, #tpu.memory_space<vmem>>, vector<1x2x256xf32>
    %33 = vector.shape_cast %32 : vector<1x2x256xf32> to vector<2x256xf32>
    %34 = tpu.concatenate %28, %31 in 0 : vector<1x256xf32>, vector<1x256xf32> -> vector<2x256xf32>
    %35 = arith.addf %33, %34 : vector<2x256xf32>
    %c0_26 = arith.constant 0 : index
    %c0_27 = arith.constant 0 : index
    %c0_28 = arith.constant 0 : index
    %36 = vector.load %arg5[%c0_26, %c0_27, %c0_28] : memref<1x2x256xf32, #tpu.memory_space<vmem>>, vector<1x2x256xf32>
    %37 = vector.shape_cast %36 : vector<1x2x256xf32> to vector<2x256xf32>
    %38 = vector.shape_cast %35 : vector<2x256xf32> to vector<1x2x256xf32>
    tpu.vector_store %arg5[%c0_26, %c0_27, %c0_28], %38 {strides = array<i32>} : memref<1x2x256xf32, #tpu.memory_space<vmem>>, vector<1x2x256xf32>,
    return
  }
  func.func @transform_0(%arg0: i32, %arg1: i32) -> (i32, i32, i32) {
    %c0_i32 = arith.constant 0 : i32
    %c0_i32_0 = arith.constant 0 : i32
    %c0_i32_1 = arith.constant 0 : i32
    return %arg0, %c0_i32, %c0_i32_0 : i32, i32, i32
  }
  func.func @transform_1(%arg0: i32, %arg1: i32) -> (i32, i32) {
    %c0_i32 = arith.constant 0 : i32
    %c0_i32_0 = arith.constant 0 : i32
    %c0_i32_1 = arith.constant 0 : i32
    return %c0_i32, %c0_i32_0 : i32, i32
  }
  func.func @transform_2(%arg0: i32, %arg1: i32) -> (i32, i32, i32) {
    %c0_i32 = arith.constant 0 : i32
    %c0_i32_0 = arith.constant 0 : i32
    return %arg0, %arg1, %c0_i32 : i32, i32, i32
  }
  func.func @transform_3(%arg0: i32, %arg1: i32) -> (i32, i32, i32) {
    %c0_i32 = arith.constant 0 : i32
    %c0_i32_0 = arith.constant 0 : i32
    %c0_i32_1 = arith.constant 0 : i32
    return %arg0, %c0_i32, %c0_i32_0 : i32, i32, i32
  }
}

</mosaic_0001>

<llo_original>
// kernel: tpu_custom_call.1
$region0: #{tpu_custom_call.1}
  #allocation0 [shape = 'u32[]', space=smem, size = 0x4, offset = 0x4, fixed_abs, tag = 'smem constant byte address 0x4 - core index']
  #allocation1 [shape = 'u32[144,128]{1,0:T(1,128)}', space=vmem, size = 0x12000, scoped, tag = 'internal scratch']
  %s0 = inlined_call_operand.vmem [shape: f32[2,7,8], index: 0, kind: input, shape index: {}]
  %s1 = inlined_call_operand.hbm [shape: f32[32,256], index: 1, kind: input, shape index: {}]
  %s2 = inlined_call_operand.hbm [shape: f32[2,4,256], index: 2, kind: output, shape index: {0}]
  %s3 = inlined_call_operand.hbm [shape: f32[2,2,256], index: 3, kind: output, shape index: {1}]
  %4 = xla_tuple %s2, %s3
  %s5 = sld [smem:[#allocation0]]
  $region57: #{tpu_custom_call.1} parent=0
    _
  %s7 = ssub.s32 1, %s5
  %s8 = scalar_select 0, %s7, %s5
  $region1: #{tpu_custom_call.1} parent=0
    #allocation2 [shape = 'u8[32768]{0}', space=vmem, size = 0x8000, scoped, tag = 'input window, operand 1, single buffered']
    #allocation3 [shape = 's32[2]{0}', space=sflag, size = 0x8, scoped, tag = 'scoped memory for tpu_custom_call.1']
    #allocation4 [shape = 's32[2]{0}', space=sflag, size = 0x8, scoped, tag = 'scoped memory for tpu_custom_call.1']
    #allocation5 [shape = 'u8[8192]{0}', space=vmem, size = 0x2000, scoped, tag = 'output window, operand 0']
    #allocation6 [shape = 'u8[4096]{0}', space=vmem, size = 0x1000, scoped, tag = 'output window, operand 1']
    #allocation7 [shape = 's32[2]{0}', space=sflag, size = 0x8, scoped, tag = 'scoped memory for tpu_custom_call.1']
    %9 = vsyncpa [#allocation3], 0
    %10 = vsyncpa [#allocation4], 0
    %s11 = scalar_lea.sflag [#allocation4], 1
    %12 = vsyncpa %s11, 0
    %13 = vsyncpa [#allocation7], 0
    %s14 = scalar_lea.sflag [#allocation7], 1
    %15 = vsyncpa %s14, 0
    loop: start=0, step=1, limit=4
    $region2: #{tpu_custom_call.1} parent=1 // loop_pre_header
      _
    $region3: #{tpu_custom_call.1} parent=1 // loop_header
      %s17 = sphi 0, %s21
      %p18 = scmp.ge.s32.totalorder %s17, 4
      %s24 = sphi 0, %s36
      %s25 = sphi 0, %s32
      %s26 = sphi 0, %s24
      %s27 = sphi 0, %s25
      %s28 = sphi 0, %s26
      %s29 = sphi 0, %s27
      %s39 = sphi 0, %s41
      %s42 = sphi 0, %s39
      %s43 = sphi 0, %s42
      %s59 = sphi 0, %s43
      %s63 = sphi 0, %s63
      %s65 = sphi 0, %s63
      %s66 = sphi 0, %s65
      %s80 = sphi 0, %s66
      %s88 = sphi 0, %s90
      %s91 = sphi 0, %s88
      %s92 = sphi 0, %s91
      %s108 = sphi 0, %s92
      %s114 = sphi 0, %s116
      %s117 = sphi 0, %s114
      %s118 = sphi 0, %s117
      %s134 = sphi 0, %s118
    $region4: #{tpu_custom_call.1} parent=1 // loop_header_branch
      %20 = sbr.rel (%p18) target = $region8
    $region5: #{tpu_custom_call.1} parent=1 // loop_body
      %s22 = ssub.s32 %s17, 1
      %s23 = ssub.s32 %s17, 2
      %s30 = sadd.s32 1, %s25
      %p31 = scmp.ge.s32.totalorder %s30, 1
      %s32 = scalar_select %p31, 0, %s30
      %s33 = sadd.s32 1, %s24
      %s34 = scalar_select %p31, %s33, %s24
      %p35 = scmp.ge.s32.totalorder %s34, 2
      %s36 = scalar_select %p35, 0, %s34
      %s37 = ssub.s32 %s24, %s36
      %p38 = scmp.eq.s32.totalorder %s37, 0
      %s40 = sadd.s32 %s39, 1
      %s41 = scalar_select %p38, %s39, %s40
      %p44 = pneg %p38
      %p45 = scmp.eq.s32.totalorder %s17, 1
      %p46 = por %p44, %p45
      %p47 = scmp.ne.s32.totalorder %s39, %s42
      %p48 = scmp.eq.s32.totalorder %s17, 0
      %p49 = por %p47, %p48
      %p50 = scmp.ne.s32.totalorder %s39, %s42
      %p51 = scmp.eq.s32.totalorder %s22, 1
      %p52 = por %p50, %p51
      %p53 = scmp.ne.s32.totalorder %s42, %s43
      %p54 = scmp.eq.s32.totalorder %s22, 0
      %p55 = por %p53, %p54
      %p56 = scmp.ne.s32.totalorder %s42, %s43
      %p57 = scmp.eq.s32.totalorder %s23, 1
      %p58 = por %p56, %p57
      %p60 = scmp.ne.s32.totalorder %s43, %s59
      %p61 = scmp.eq.s32.totalorder %s23, 0
      %p62 = por %p60, %p61
      %s64 = sadd.s32 %s63, 1
      %p67 = scmp.eq.s32.totalorder %s17, 1
      %p68 = scmp.ne.s32.totalorder %s63, %s65
      %p69 = scmp.eq.s32.totalorder %s17, 0
      %p70 = por %p68, %p69
      %p71 = scmp.ne.s32.totalorder %s63, %s65
      %p72 = scmp.eq.s32.totalorder %s22, 1
      %p73 = por %p71, %p72
      %p74 = scmp.ne.s32.totalorder %s65, %s66
      %p75 = scmp.eq.s32.totalorder %s22, 0
      %p76 = por %p74, %p75
      %p77 = scmp.ne.s32.totalorder %s65, %s66
      %p78 = scmp.eq.s32.totalorder %s23, 1
      %p79 = por %p77, %p78
      %p81 = scmp.ne.s32.totalorder %s66, %s80
      %p82 = scmp.eq.s32.totalorder %s23, 0
      %p83 = por %p81, %p82
      %s84 = ssub.s32 %s24, %s36
      %s85 = ssub.s32 %s25, %s32
      %s86 = sor.u32 %s84, %s85
      %p87 = scmp.eq.s32.totalorder %s86, 0
      %s89 = sadd.s32 %s88, 1
      %s90 = scalar_select %p87, %s88, %s89
      %p93 = pneg %p87
      %p94 = scmp.eq.s32.totalorder %s17, 1
      %p95 = por %p93, %p94
      %p96 = scmp.ne.s32.totalorder %s88, %s91
      %p97 = scmp.eq.s32.totalorder %s17, 0
      %p98 = por %p96, %p97
      %p99 = scmp.ne.s32.totalorder %s88, %s91
      %p100 = scmp.eq.s32.totalorder %s22, 1
      %p101 = por %p99, %p100
      %p102 = scmp.ne.s32.totalorder %s91, %s92
      %p103 = scmp.eq.s32.totalorder %s22, 0
      %p104 = por %p102, %p103
      %p105 = scmp.ne.s32.totalorder %s91, %s92
      %p106 = scmp.eq.s32.totalorder %s23, 1
      %p107 = por %p105, %p106
      %p109 = scmp.ne.s32.totalorder %s92, %s108
      %p110 = scmp.eq.s32.totalorder %s23, 0
      %p111 = por %p109, %p110
      %s112 = ssub.s32 %s24, %s36
      %p113 = scmp.eq.s32.totalorder %s112, 0
      %s115 = sadd.s32 %s114, 1
      %s116 = scalar_select %p113, %s114, %s115
      %p119 = pneg %p113
      %p120 = scmp.eq.s32.totalorder %s17, 1
      %p121 = por %p119, %p120
      %p122 = scmp.ne.s32.totalorder %s114, %s117
      %p123 = scmp.eq.s32.totalorder %s17, 0
      %p124 = por %p122, %p123
      %p125 = scmp.ne.s32.totalorder %s114, %s117
      %p126 = scmp.eq.s32.totalorder %s22, 1
      %p127 = por %p125, %p126
      %p128 = scmp.ne.s32.totalorder %s117, %s118
      %p129 = scmp.eq.s32.totalorder %s22, 0
      %p130 = por %p128, %p129
      %p131 = scmp.ne.s32.totalorder %s117, %s118
      %p132 = scmp.eq.s32.totalorder %s23, 1
      %p133 = por %p131, %p132
      %p135 = scmp.ne.s32.totalorder %s118, %s134
      %p136 = scmp.eq.s32.totalorder %s23, 0
      %p137 = por %p135, %p136
      %p138 = scmp.le.s32.totalorder 1, %s17
      %p139 = scmp.lt.s32.totalorder %s17, 3
      %p140 = pnand %p138, %p139
      %p141 = pneg %p140
      // Predicated region
      $region9: #{tpu_custom_call.1} parent=5 // pred_check
        _
      $region10: #{tpu_custom_call.1} parent=5 // pred_check_branch
        %143 = sbr.rel (%p140) target = $region12
      $region11: #{tpu_custom_call.1} parent=5 // pred_region
        %s144 = ssub.s32 %s17, 1
        // Predicated region
        $region13: #{tpu_custom_call.1} parent=11 // pred_check
          %p145 = pneg %p76
        $region14: #{tpu_custom_call.1} parent=11 // pred_check_branch
          %147 = sbr.rel (%p145) target = $region16
        $region15: #{tpu_custom_call.1} parent=11 // pred_region
          %s149 = ssub.s32 1024, 1024
          %150 = vsyncadd [#allocation3], %s149
          %s151 = sshll.u32 [#allocation2], 4
          %s152 = int_to_ptr.vmem [resolvable:$true] %s151
          %157 = dma.hbm_to_vmem [thread:$0]  %s1, 1024, %s152, [#allocation3], 256, 256, 16
        $region16: #{tpu_custom_call.1} parent=11 // pred_fallthru
          _
      $region12: #{tpu_custom_call.1} parent=5 // pred_fallthru
        _
      %p158 = scmp.lt.s32.totalorder %s17, 2
      // Predicated region
      $region17: #{tpu_custom_call.1} parent=5 // pred_check
        %p159 = pneg %p158
      $region18: #{tpu_custom_call.1} parent=5 // pred_check_branch
        %161 = sbr.rel (%p159) target = $region20
      $region19: #{tpu_custom_call.1} parent=5 // pred_region
        // Predicated region
        $region21: #{tpu_custom_call.1} parent=19 // pred_check
          %p162 = pneg %p49
        $region22: #{tpu_custom_call.1} parent=19 // pred_check_branch
          %164 = sbr.rel (%p162) target = $region24
        $region23: #{tpu_custom_call.1} parent=19 // pred_region
          %p165 = scmp.lt.s32.totalorder %s24, 1
          %s166 = scalar_select %p165, %s24, 1
          %s167 = smul.addr %s166, 8
          %s168 = scalar_lea.vmem %s0, %s167
        $region24: #{tpu_custom_call.1} parent=19 // pred_fallthru
          _
      $region20: #{tpu_custom_call.1} parent=5 // pred_fallthru
        _
      %p169 = scmp.le.s32.totalorder 1, %s17
      %p170 = scmp.lt.s32.totalorder %s17, 3
      %p171 = pnand %p169, %p170
      %p172 = pneg %p171
      // Predicated region
      $region25: #{tpu_custom_call.1} parent=5 // pred_check
        _
      $region26: #{tpu_custom_call.1} parent=5 // pred_check_branch
        %174 = sbr.rel (%p171) target = $region28
      $region27: #{tpu_custom_call.1} parent=5 // pred_region
        %s175 = ssub.s32 %s17, 1
        // Predicated region
        $region29: #{tpu_custom_call.1} parent=27 // pred_check
          %p176 = pneg %p76
        $region30: #{tpu_custom_call.1} parent=27 // pred_check_branch
          %178 = sbr.rel (%p176) target = $region32
        $region31: #{tpu_custom_call.1} parent=27 // pred_region
          %179 = dma.done [#allocation3], 1024
        $region32: #{tpu_custom_call.1} parent=27 // pred_fallthru
          _
        %p180 = scmp.lt.s32.totalorder %s26, 1
        %s181 = scalar_select %p180, %s26, 1
        %s182 = smul.addr %s181, 8
        %s183 = scalar_lea.vmem %s0, %s182
        %p184 = pneg %p55
        %p185 = pneg %p52
        %p186 = pneg %p76
        %p187 = pneg %p73
        %p188 = pneg %p104
        %p189 = pneg %p101
        %s190 = sand.u32 %s91, 1
        %s191 = scalar_lea.sflag [#allocation4], %s190
        %s192 = sand.u32 %s91, 1
        %s193 = smul.addr %s192, 8
        %s194 = scalar_lea.vmem [#allocation5], %s193
        %p195 = pneg %p130
        %p196 = pneg %p127
        %s197 = sand.u32 %s117, 1
        %s198 = scalar_lea.sflag [#allocation7], %s197
        %s199 = sand.u32 %s117, 1
        %s200 = smul.addr %s199, 4
        %s201 = scalar_lea.vmem [#allocation6], %s200
        %p202 = scmp.lt.s32.totalorder %s26, 1
        %s203 = scalar_select %p202, %s26, 1
        %s204 = smul.addr %s203, 8
        %s205 = scalar_lea.vmem %s0, %s204
        %p206 = scmp.eq.s32.totalorder %s27, 0
        // Predicated region
        $region33: #{tpu_custom_call.1} parent=27 // pred_check
          %p207 = pneg %p206
        $region34: #{tpu_custom_call.1} parent=27 // pred_check_branch
          %209 = sbr.rel (%p207) target = $region36
        $region35: #{tpu_custom_call.1} parent=27 // pred_region
          %210 = vst [vmem:[%s201] sm:$0xf] 0.0
        $region36: #{tpu_custom_call.1} parent=27 // pred_fallthru
          _
        %v211 = vld [vmem:[%s205] sm:$0xf]
        %v212 = vld [vmem:[#allocation2] sm:$0xff]
        %v213 = vld [vmem:[#allocation2 + $0x8] sm:$0xff]
        %v214 = vld [vmem:[%s205 + $0x1] sm:$0xf]
        %v215 = vld [vmem:[#allocation2 + $0x10] sm:$0xff]
        %v216 = vld [vmem:[#allocation2 + $0x18] sm:$0xff]
        %vm217 = vcmask 64512
        %v219 = vsel %vm217, %v214, 0
        %221 = vmatprep.subr.mxu0 %v216
        %222 = vmatpush1.msra.mxu0 %v215
        %223 = vmatprep.subr.mxu0 0.0
        %224 = vmatpush1.msra.mxu0 0.0
        %225 = vmatprep.subr.mxu0 0.0
        %226 = vmatpush1.msra.mxu0 0.0
        %227 = vmatprep.subr.mxu0 0.0
        %228 = vmatpush1.msra.mxu0 0.0
        %229 = vmatprep.subr.mxu0 0.0
        %230 = vmatpush1.msra.mxu0 0.0
        %231 = vmatprep.subr.mxu0 0.0
        %232 = vmatpush1.msra.mxu0 0.0
        %233 = vmatprep.subr.mxu0 0.0
        %234 = vmatpush1.msra.mxu0 0.0
        %235 = vmatprep.subr.mxu0 0.0
        %236 = vmatpush1.msra.mxu0 0.0
        %237 = vmatprep.subr.mxu0 0.0
        %238 = vmatpush1.msra.mxu0 0.0
        %239 = vmatprep.subr.mxu0 0.0
        %240 = vmatpush1.msra.mxu0 0.0
        %241 = vmatprep.subr.mxu0 0.0
        %242 = vmatpush1.msra.mxu0 0.0
        %243 = vmatprep.subr.mxu0 0.0
        %244 = vmatpush1.msra.mxu0 0.0
        %245 = vmatprep.subr.mxu0 0.0
        %246 = vmatpush1.msra.mxu0 0.0
        %247 = vmatprep.subr.mxu0 0.0
        %248 = vmatpush1.msra.mxu0 0.0
        %249 = vmatprep.subr.mxu0 0.0
        %250 = vmatpush1.msra.mxu0 0.0
        %251 = vmatprep.subr.mxu0 0.0
        %252 = vmatpush1.msra.mxu0 0.0
        %253 = vmatprep.subr.mxu0 0.0
        %254 = vmatpush1.msra.mxu0 0.0
        %255 = vmatprep.subr.mxu0 0.0
        %256 = vmatpush1.msra.mxu0 0.0
        %257 = vmatprep.subr.mxu0 0.0
        %258 = vmatpush1.msra.mxu0 0.0
        %259 = vmatprep.subr.mxu0 0.0
        %260 = vmatpush1.msra.mxu0 0.0
        %261 = vmatprep.subr.mxu0 0.0
        %262 = vmatpush1.msra.mxu0 0.0
        %263 = vmatprep.subr.mxu0 0.0
        %264 = vmatpush1.msra.mxu0 0.0
        %265 = vmatprep.subr.mxu0 0.0
        %266 = vmatpush1.msra.mxu0 0.0
        %267 = vmatprep.subr.mxu0 0.0
        %268 = vmatpush1.msra.mxu0 0.0
        %269 = vmatprep.subr.mxu0 0.0
        %270 = vmatpush1.msra.mxu0 0.0
        %271 = vmatprep.subr.mxu0 0.0
        %272 = vmatpush1.msra.mxu0 0.0
        %273 = vmatprep.subr.mxu0 0.0
        %274 = vmatpush1.msra.mxu0 0.0
        %275 = vmatprep.subr.mxu0 0.0
        %276 = vmatpush1.msra.mxu0 0.0
        %277 = vmatprep.subr.mxu0 0.0
        %278 = vmatpush1.msra.mxu0 0.0
        %279 = vmatprep.subr.mxu0 0.0
        %280 = vmatpush1.msra.mxu0 0.0
        %281 = vmatprep.subr.mxu0 0.0
        %282 = vmatpush1.msra.mxu0 0.0
        %283 = vmatprep.subr.mxu0 0.0
        %284 = vmatpush1.msra.mxu0 0.0
        %285 = vmatprep.mubr.f32.mxu0 0.0
        %286 = vmatmul.mubr.f32.gmra.mrb[0].mxu0 %v219
        %v287 = vpop.f32.mrb[0].mxu0
        %v288 = vadd.f32 0.0, %v287
        %v289 = vpop.f32.mrb[0].mxu0
        %v290 = vadd.f32 0.0, %v289
        %291 = vdwg.mxu0
        %v293 = vsel %vm217, %v211, 0
        %295 = vmatprep.subr.mxu0 %v213
        %296 = vmatpush1.msra.mxu0 %v212
        %297 = vmatprep.subr.mxu0 0.0
        %298 = vmatpush1.msra.mxu0 0.0
        %299 = vmatprep.subr.mxu0 0.0
        %300 = vmatpush1.msra.mxu0 0.0
        %301 = vmatprep.subr.mxu0 0.0
        %302 = vmatpush1.msra.mxu0 0.0
        %303 = vmatprep.subr.mxu0 0.0
        %304 = vmatpush1.msra.mxu0 0.0
        %305 = vmatprep.subr.mxu0 0.0
        %306 = vmatpush1.msra.mxu0 0.0
        %307 = vmatprep.subr.mxu0 0.0
        %308 = vmatpush1.msra.mxu0 0.0
        %309 = vmatprep.subr.mxu0 0.0
        %310 = vmatpush1.msra.mxu0 0.0
        %311 = vmatprep.subr.mxu0 0.0
        %312 = vmatpush1.msra.mxu0 0.0
        %313 = vmatprep.subr.mxu0 0.0
        %314 = vmatpush1.msra.mxu0 0.0
        %315 = vmatprep.subr.mxu0 0.0
        %316 = vmatpush1.msra.mxu0 0.0
        %317 = vmatprep.subr.mxu0 0.0
        %318 = vmatpush1.msra.mxu0 0.0
        %319 = vmatprep.subr.mxu0 0.0
        %320 = vmatpush1.msra.mxu0 0.0
        %321 = vmatprep.subr.mxu0 0.0
        %322 = vmatpush1.msra.mxu0 0.0
        %323 = vmatprep.subr.mxu0 0.0
        %324 = vmatpush1.msra.mxu0 0.0
        %325 = vmatprep.subr.mxu0 0.0
        %326 = vmatpush1.msra.mxu0 0.0
        %327 = vmatprep.subr.mxu0 0.0
        %328 = vmatpush1.msra.mxu0 0.0
        %329 = vmatprep.subr.mxu0 0.0
        %330 = vmatpush1.msra.mxu0 0.0
        %331 = vmatprep.subr.mxu0 0.0
        %332 = vmatpush1.msra.mxu0 0.0
        %333 = vmatprep.subr.mxu0 0.0
        %334 = vmatpush1.msra.mxu0 0.0
        %335 = vmatprep.subr.mxu0 0.0
        %336 = vmatpush1.msra.mxu0 0.0
        %337 = vmatprep.subr.mxu0 0.0
        %338 = vmatpush1.msra.mxu0 0.0
        %339 = vmatprep.subr.mxu0 0.0
        %340 = vmatpush1.msra.mxu0 0.0
        %341 = vmatprep.subr.mxu0 0.0
        %342 = vmatpush1.msra.mxu0 0.0
        %343 = vmatprep.subr.mxu0 0.0
        %344 = vmatpush1.msra.mxu0 0.0
        %345 = vmatprep.subr.mxu0 0.0
        %346 = vmatpush1.msra.mxu0 0.0
        %347 = vmatprep.subr.mxu0 0.0
        %348 = vmatpush1.msra.mxu0 0.0
        %349 = vmatprep.subr.mxu0 0.0
        %350 = vmatpush1.msra.mxu0 0.0
        %351 = vmatprep.subr.mxu0 0.0
        %352 = vmatpush1.msra.mxu0 0.0
        %353 = vmatprep.subr.mxu0 0.0
        %354 = vmatpush1.msra.mxu0 0.0
        %355 = vmatprep.subr.mxu0 0.0
        %356 = vmatpush1.msra.mxu0 0.0
        %357 = vmatprep.subr.mxu0 0.0
        %358 = vmatpush1.msra.mxu0 0.0
        %359 = vmatprep.mubr.f32.mxu0 0.0
        %360 = vmatmul.mubr.f32.gmra.mrb[0].mxu0 %v293
        %v361 = vpop.f32.mrb[0].mxu0
        %v362 = vadd.f32 %v288, %v361
        %v363 = vpop.f32.mrb[0].mxu0
        %v364 = vadd.f32 %v290, %v363
        %365 = vdwg.mxu0
        %v366 = vld [vmem:[%s205 + $0x2] sm:$0xf]
        %v367 = vld [vmem:[#allocation2 + $0x20] sm:$0xff]
        %v368 = vld [vmem:[#allocation2 + $0x28] sm:$0xff]
        %v370 = vsel %vm217, %v366, 0
        %372 = vmatprep.subr.mxu0 %v368
        %373 = vmatpush1.msra.mxu0 %v367
        %374 = vmatprep.subr.mxu0 0.0
        %375 = vmatpush1.msra.mxu0 0.0
        %376 = vmatprep.subr.mxu0 0.0
        %377 = vmatpush1.msra.mxu0 0.0
        %378 = vmatprep.subr.mxu0 0.0
        %379 = vmatpush1.msra.mxu0 0.0
        %380 = vmatprep.subr.mxu0 0.0
        %381 = vmatpush1.msra.mxu0 0.0
        %382 = vmatprep.subr.mxu0 0.0
        %383 = vmatpush1.msra.mxu0 0.0
        %384 = vmatprep.subr.mxu0 0.0
        %385 = vmatpush1.msra.mxu0 0.0
        %386 = vmatprep.subr.mxu0 0.0
        %387 = vmatpush1.msra.mxu0 0.0
        %388 = vmatprep.subr.mxu0 0.0
        %389 = vmatpush1.msra.mxu0 0.0
        %390 = vmatprep.subr.mxu0 0.0
        %391 = vmatpush1.msra.mxu0 0.0
        %392 = vmatprep.subr.mxu0 0.0
        %393 = vmatpush1.msra.mxu0 0.0
        %394 = vmatprep.subr.mxu0 0.0
        %395 = vmatpush1.msra.mxu0 0.0
        %396 = vmatprep.subr.mxu0 0.0
        %397 = vmatpush1.msra.mxu0 0.0
        %398 = vmatprep.subr.mxu0 0.0
        %399 = vmatpush1.msra.mxu0 0.0
        %400 = vmatprep.subr.mxu0 0.0
        %401 = vmatpush1.msra.mxu0 0.0
        %402 = vmatprep.subr.mxu0 0.0
        %403 = vmatpush1.msra.mxu0 0.0
        %404 = vmatprep.subr.mxu0 0.0
        %405 = vmatpush1.msra.mxu0 0.0
        %406 = vmatprep.subr.mxu0 0.0
        %407 = vmatpush1.msra.mxu0 0.0
        %408 = vmatprep.subr.mxu0 0.0
        %409 = vmatpush1.msra.mxu0 0.0
        %410 = vmatprep.subr.mxu0 0.0
        %411 = vmatpush1.msra.mxu0 0.0
        %412 = vmatprep.subr.mxu0 0.0
        %413 = vmatpush1.msra.mxu0 0.0
        %414 = vmatprep.subr.mxu0 0.0
        %415 = vmatpush1.msra.mxu0 0.0
        %416 = vmatprep.subr.mxu0 0.0
        %417 = vmatpush1.msra.mxu0 0.0
        %418 = vmatprep.subr.mxu0 0.0
        %419 = vmatpush1.msra.mxu0 0.0
        %420 = vmatprep.subr.mxu0 0.0
        %421 = vmatpush1.msra.mxu0 0.0
        %422 = vmatprep.subr.mxu0 0.0
        %423 = vmatpush1.msra.mxu0 0.0
        %424 = vmatprep.subr.mxu0 0.0
        %425 = vmatpush1.msra.mxu0 0.0
        %426 = vmatprep.subr.mxu0 0.0
        %427 = vmatpush1.msra.mxu0 0.0
        %428 = vmatprep.subr.mxu0 0.0
        %429 = vmatpush1.msra.mxu0 0.0
        %430 = vmatprep.subr.mxu0 0.0
        %431 = vmatpush1.msra.mxu0 0.0
        %432 = vmatprep.subr.mxu0 0.0
        %433 = vmatpush1.msra.mxu0 0.0
        %434 = vmatprep.subr.mxu0 0.0
        %435 = vmatpush1.msra.mxu0 0.0
        %436 = vmatprep.mubr.f32.mxu0 0.0
        %437 = vmatmul.mubr.f32.gmra.mrb[0].mxu0 %v370
        %v438 = vpop.f32.mrb[0].mxu0
        %v439 = vadd.f32 0.0, %v438
        %v440 = vpop.f32.mrb[0].mxu0
        %v441 = vadd.f32 0.0, %v440
        %442 = vdwg.mxu0
        %v443 = vadd.f32 %v362, %v439
        %v444 = vadd.f32 %v364, %v441
        %v445 = vld [vmem:[%s205 + $0x3] sm:$0xf]
        %v446 = vld [vmem:[#allocation2 + $0x30] sm:$0xff]
        %v447 = vld [vmem:[#allocation2 + $0x38] sm:$0xff]
        %v449 = vsel %vm217, %v445, 0
        %451 = vmatprep.subr.mxu0 %v447
        %452 = vmatpush1.msra.mxu0 %v446
        %453 = vmatprep.subr.mxu0 0.0
        %454 = vmatpush1.msra.mxu0 0.0
        %455 = vmatprep.subr.mxu0 0.0
        %456 = vmatpush1.msra.mxu0 0.0
        %457 = vmatprep.subr.mxu0 0.0
        %458 = vmatpush1.msra.mxu0 0.0
        %459 = vmatprep.subr.mxu0 0.0
        %460 = vmatpush1.msra.mxu0 0.0
        %461 = vmatprep.subr.mxu0 0.0
        %462 = vmatpush1.msra.mxu0 0.0
        %463 = vmatprep.subr.mxu0 0.0
        %464 = vmatpush1.msra.mxu0 0.0
        %465 = vmatprep.subr.mxu0 0.0
        %466 = vmatpush1.msra.mxu0 0.0
        %467 = vmatprep.subr.mxu0 0.0
        %468 = vmatpush1.msra.mxu0 0.0
        %469 = vmatprep.subr.mxu0 0.0
        %470 = vmatpush1.msra.mxu0 0.0
        %471 = vmatprep.subr.mxu0 0.0
        %472 = vmatpush1.msra.mxu0 0.0
        %473 = vmatprep.subr.mxu0 0.0
        %474 = vmatpush1.msra.mxu0 0.0
        %475 = vmatprep.subr.mxu0 0.0
        %476 = vmatpush1.msra.mxu0 0.0
        %477 = vmatprep.subr.mxu0 0.0
        %478 = vmatpush1.msra.mxu0 0.0
        %479 = vmatprep.subr.mxu0 0.0
        %480 = vmatpush1.msra.mxu0 0.0
        %481 = vmatprep.subr.mxu0 0.0
        %482 = vmatpush1.msra.mxu0 0.0
        %483 = vmatprep.subr.mxu0 0.0
        %484 = vmatpush1.msra.mxu0 0.0
        %485 = vmatprep.subr.mxu0 0.0
        %486 = vmatpush1.msra.mxu0 0.0
        %487 = vmatprep.subr.mxu0 0.0
        %488 = vmatpush1.msra.mxu0 0.0
        %489 = vmatprep.subr.mxu0 0.0
        %490 = vmatpush1.msra.mxu0 0.0
        %491 = vmatprep.subr.mxu0 0.0
        %492 = vmatpush1.msra.mxu0 0.0
        %493 = vmatprep.subr.mxu0 0.0
        %494 = vmatpush1.msra.mxu0 0.0
        %495 = vmatprep.subr.mxu0 0.0
        %496 = vmatpush1.msra.mxu0 0.0
        %497 = vmatprep.subr.mxu0 0.0
        %498 = vmatpush1.msra.mxu0 0.0
        %499 = vmatprep.subr.mxu0 0.0
        %500 = vmatpush1.msra.mxu0 0.0
        %501 = vmatprep.subr.mxu0 0.0
        %502 = vmatpush1.msra.mxu0 0.0
        %503 = vmatprep.subr.mxu0 0.0
        %504 = vmatpush1.msra.mxu0 0.0
        %505 = vmatprep.subr.mxu0 0.0
        %506 = vmatpush1.msra.mxu0 0.0
        %507 = vmatprep.subr.mxu0 0.0
        %508 = vmatpush1.msra.mxu0 0.0
        %509 = vmatprep.subr.mxu0 0.0
        %510 = vmatpush1.msra.mxu0 0.0
        %511 = vmatprep.subr.mxu0 0.0
        %512 = vmatpush1.msra.mxu0 0.0
        %513 = vmatprep.subr.mxu0 0.0
        %514 = vmatpush1.msra.mxu0 0.0
        %515 = vmatprep.mubr.f32.mxu0 0.0
        %516 = vmatmul.mubr.f32.gmra.mrb[0].mxu0 %v449
        %v517 = vpop.f32.mrb[0].mxu0
        %v518 = vadd.f32 0.0, %v517
        %v519 = vpop.f32.mrb[0].mxu0
        %v520 = vadd.f32 0.0, %v519
        %521 = vdwg.mxu0
        %v522 = vadd.f32 %v443, %v518
        %v523 = vadd.f32 %v444, %v520
        %v526 = vcombine.low %v522, %v523
        %528 = vst [vmem:[%s194] sm:$0xff] %v526
        %vm529 = vcmask 1043456
        %v530 = vsel %vm529, %v522, 0.0
        %v531 = vrot.slane %v530, 4
        %v532 = vadd.f32 %v530, %v531
        %v533 = vrot.slane %v532, 2
        %v534 = vadd.f32 %v532, %v533
        %v535 = vrot.slane %v534, 1
        %v536 = vadd.f32 %v534, %v535
        %v537 = vsel %vm529, %v523, 0.0
        %v538 = vrot.slane %v537, 4
        %v539 = vadd.f32 %v537, %v538
        %v540 = vrot.slane %v539, 2
        %v541 = vadd.f32 %v539, %v540
        %v542 = vrot.slane %v541, 1
        %v543 = vadd.f32 %v541, %v542
        %v544 = vmul.f32 %v522, %v522
        %v545 = vmul.f32 %v523, %v523
        %v546 = vsel %vm529, %v544, 0.0
        %v547 = vrot.slane %v546, 4
        %v548 = vadd.f32 %v546, %v547
        %v549 = vrot.slane %v548, 2
        %v550 = vadd.f32 %v548, %v549
        %v551 = vrot.slane %v550, 1
        %v552 = vadd.f32 %v550, %v551
        %v553 = vsel %vm529, %v545, 0.0
        %v554 = vrot.slane %v553, 4
        %v555 = vadd.f32 %v553, %v554
        %v556 = vrot.slane %v555, 2
        %v557 = vadd.f32 %v555, %v556
        %v558 = vrot.slane %v557, 1
        %v559 = vadd.f32 %v557, %v558
        %v560 = vld [vmem:[%s201] sm:$0xf]
        %vm561 = vcmask 1040384
        %v562 = vsel %vm561, %v536, %v552
        %v563 = vsel %vm561, %v543, %v559
        %v566 = vcombine.low %v562, %v563
        %v568 = vunpack.c.l.s4 1983009808
        %v569 = vunpack.c.0.s8 %v568
        %v570 = vlaneseq
        %v571 = vshrl.u32 %v570, 7
        %v572 = vsub.s32 %v569, %v571
        %v573 = vrot.slane %v566, %v572
        %v575 = vadd.f32 %v560, %v573
        %576 = vst [vmem:[%s201] sm:$0xf] %v575
        %s577 = sand.u32 %s91, 1
        %s578 = scalar_lea.sflag [#allocation4], %s577
        %s579 = sand.u32 %s91, 1
        %s580 = smul.addr %s579, 8
        %s581 = scalar_lea.vmem [#allocation5], %s580
        %s582 = sand.u32 %s117, 1
        %s583 = scalar_lea.sflag [#allocation7], %s582
        %s584 = sand.u32 %s117, 1
        %s585 = smul.addr %s584, 4
        %s586 = scalar_lea.vmem [#allocation6], %s585
        // Predicated region
        $region37: #{tpu_custom_call.1} parent=27 // pred_check
          %p587 = pneg %p101
        $region38: #{tpu_custom_call.1} parent=27 // pred_check_branch
          %589 = sbr.rel (%p587) target = $region40
        $region39: #{tpu_custom_call.1} parent=27 // pred_region
          %s591 = ssub.s32 128, 128
          %592 = vsyncadd %s578, %s591
          %s593 = smul.addr %s27, 2
          %s594 = smul.addr %s26, 2
          %s595 = sadd.s32 %s593, %s594
          %s596 = smul.addr %s595, 64
          %s597 = scalar_lea.hbm %s2, %s596
          %s599 = sshll.u32 %s581, 4
          %s600 = int_to_ptr.vmem [resolvable:$true] %s599
          %602 = dma.vmem_to_hbm [thread:$0]  %s600, 128, %s597, %s578
        $region40: #{tpu_custom_call.1} parent=27 // pred_fallthru
          _
        // Predicated region
        $region41: #{tpu_custom_call.1} parent=27 // pred_check
          %p603 = pneg %p127
        $region42: #{tpu_custom_call.1} parent=27 // pred_check_branch
          %605 = sbr.rel (%p603) target = $region44
        $region43: #{tpu_custom_call.1} parent=27 // pred_region
          %s607 = ssub.s32 64, 64
          %608 = vsyncadd %s583, %s607
          %s609 = smul.addr %s26, 2
          %s610 = smul.addr %s609, 32
          %s611 = scalar_lea.hbm %s3, %s610
          %s613 = sshll.u32 %s586, 4
          %s614 = int_to_ptr.vmem [resolvable:$true] %s613
          %616 = dma.vmem_to_hbm [thread:$0]  %s614, 64, %s611, %s583
        $region44: #{tpu_custom_call.1} parent=27 // pred_fallthru
          _
      $region28: #{tpu_custom_call.1} parent=5 // pred_fallthru
        _
      %p617 = scmp.le.s32.totalorder 2, %s17
      // Predicated region
      $region45: #{tpu_custom_call.1} parent=5 // pred_check
        %p618 = pneg %p617
      $region46: #{tpu_custom_call.1} parent=5 // pred_check_branch
        %620 = sbr.rel (%p618) target = $region48
      $region47: #{tpu_custom_call.1} parent=5 // pred_region
        %s621 = ssub.s32 %s17, 2
        // Predicated region
        $region49: #{tpu_custom_call.1} parent=47 // pred_check
          %p622 = pneg %p107
        $region50: #{tpu_custom_call.1} parent=47 // pred_check_branch
          %624 = sbr.rel (%p622) target = $region52
        $region51: #{tpu_custom_call.1} parent=47 // pred_region
          %s625 = sand.u32 %s92, 1
          %s626 = scalar_lea.sflag [#allocation4], %s625
          %s627 = sand.u32 %s92, 1
          %s628 = smul.addr %s627, 8
          %s629 = scalar_lea.vmem [#allocation5], %s628
          %630 = dma.done %s626, 128
        $region52: #{tpu_custom_call.1} parent=47 // pred_fallthru
          _
        // Predicated region
        $region53: #{tpu_custom_call.1} parent=47 // pred_check
          %p631 = pneg %p133
        $region54: #{tpu_custom_call.1} parent=47 // pred_check_branch
          %633 = sbr.rel (%p631) target = $region56
        $region55: #{tpu_custom_call.1} parent=47 // pred_region
          %s634 = sand.u32 %s118, 1
          %s635 = scalar_lea.sflag [#allocation7], %s634
          %s636 = sand.u32 %s118, 1
          %s637 = smul.addr %s636, 4
          %s638 = scalar_lea.vmem [#allocation6], %s637
          %639 = dma.done %s635, 64
        $region56: #{tpu_custom_call.1} parent=47 // pred_fallthru
          _
      $region48: #{tpu_custom_call.1} parent=5 // pred_fallthru
        _
    $region6: #{tpu_custom_call.1} parent=1 // loop_footer
      %s21 = sadd.s32 1, %s17
    $region7: #{tpu_custom_call.1} parent=1 // loop_footer_branch
      %16 = sbr.rel target = $region3
    $region8: #{tpu_custom_call.1} parent=1 // loop_exit
      _
    %640 = vsyncpa [#allocation3], 1
    %s641 = scalar_lea.sflag [#allocation3], 1
    %642 = vsyncpa %s641, 1
    %643 = vsyncpa [#allocation4], 1
    %s644 = scalar_lea.sflag [#allocation4], 1
    %645 = vsyncpa %s644, 1
    %646 = vsyncpa [#allocation7], 1
    %s647 = scalar_lea.sflag [#allocation7], 1
    %648 = vsyncpa %s647, 1

</llo_original>
